<compile_context>
chip_gen: v7x
topology: tpu7x:2x2x1
jax: 0.10.0
libtpu: 0.0.40
codegen_flags: <defaults>
</compile_context>

<pallas_src>
import jax
import jax.numpy as jnp
from jax.experimental import pallas as pl
from jax.experimental.pallas import tpu as pltpu

OBSERVATION_COUNT = 10
IRRELEVANT_DATA_MULTIPLIER = 5  # value used in the original repo
INPUT_SIZE = 10
HIDDEN = 100
OUT_SIZE = OBSERVATION_COUNT * IRRELEVANT_DATA_MULTIPLIER  # 50
NEG_SLOPE = 0.01  # torch leaky_relu default

LANE = 128  # padded feature width (lane-dense on TPU)

LAYER_DIMS = (
    ("linear1", INPUT_SIZE, HIDDEN),
    ("linear2", HIDDEN, HIDDEN),
    ("linear3", HIDDEN, HIDDEN),
    ("linear4", HIDDEN, OUT_SIZE),
)


def _round_up(n, m):
    return ((n + m - 1) // m) * m


def _leaky_relu(v):
    return jnp.where(v > 0, v, NEG_SLOPE * v)


def generator_kernel(x_ref,
                     w1_ref, b1_ref,
                     w2_ref, b2_ref,
                     w3_ref, b3_ref,
                     w4_ref, b4_ref,
                     o_ref):
    """Whole forward pass fused for one (TB, 128) batch tile.

    Weights arrive as bf16 (128,128) tiles; every dot is a bf16 MXU matmul with
    f32 accumulation.  Bias add + leaky_relu stay f32 on the VPU (v5e has no
    bf16 VPU path).  Padded lanes carry exact zeros throughout.
    """
    h = x_ref[...].astype(jnp.bfloat16)
    h = _leaky_relu(
        jnp.dot(h, w1_ref[...], preferred_element_type=jnp.float32) + b1_ref[...])
    h = _leaky_relu(
        jnp.dot(h.astype(jnp.bfloat16), w2_ref[...],
                preferred_element_type=jnp.float32) + b2_ref[...])
    h = _leaky_relu(
        jnp.dot(h.astype(jnp.bfloat16), w3_ref[...],
                preferred_element_type=jnp.float32) + b3_ref[...])
    y = (jnp.dot(h.astype(jnp.bfloat16), w4_ref[...],
                 preferred_element_type=jnp.float32) + b4_ref[...])
    o_ref[...] = y.astype(o_ref.dtype)


def init_params(key):
    """PyTorch-style uniform fan-in init; stored un-padded, f32, (in, out)."""
    params = {}
    for name, fan_in, fan_out in LAYER_DIMS:
        key, kw, kb = jax.random.split(key, 3)
        bound = 1.0 / (fan_in ** 0.5)
        # Stored already transposed: (in_features, out_features) so y = x @ W + b.
        params[name + "_w"] = jax.random.uniform(
            kw, (fan_in, fan_out), jnp.float32, -bound, bound)
        params[name + "_b"] = jax.random.uniform(
            kb, (1, fan_out), jnp.float32, -bound, bound)
    return params


def pad_params(params, weight_dtype=jnp.bfloat16):
    """Zero-pad every layer to 128x128 (weights, bf16) / 1x128 (biases, f32)."""
    padded = {}
    for name, fan_in, fan_out in LAYER_DIMS:
        w = params[name + "_w"]
        b = params[name + "_b"]
        wp = jnp.zeros((LANE, LANE), jnp.float32).at[:fan_in, :fan_out].set(w)
        bp = jnp.zeros((1, LANE), jnp.float32).at[:, :fan_out].set(b)
        padded[name + "_w"] = wp.astype(weight_dtype)
        padded[name + "_b"] = bp  # bias stays f32 (added post-accumulation)
    return padded


def generator_forward(x, padded_params, *, tb=1024):
    """Run the fused generator. x: (batch, 10) f32 -> (batch, 50) f32."""
    batch, in_features = x.shape
    assert in_features == INPUT_SIZE, in_features

    # Batch tile: large to amortize per-step overhead, but never bigger than
    # the (8-row aligned) batch itself.
    tb = min(tb, _round_up(batch, 8))
    padded_batch = _round_up(batch, tb)

    # Lane-dense, zero-padded input (zeros feed zero weight rows -> exact).
    xp = jnp.zeros((padded_batch, LANE), jnp.float32).at[:batch, :INPUT_SIZE].set(x)

    grid = (padded_batch // tb,)
    row_spec = pl.BlockSpec((tb, LANE), lambda i: (i, 0))        # streamed per tile
    w_spec = pl.BlockSpec((LANE, LANE), lambda i: (0, 0))        # VMEM-resident
    b_spec = pl.BlockSpec((1, LANE), lambda i: (0, 0))           # VMEM-resident

    args = (
        xp,
        padded_params["linear1_w"], padded_params["linear1_b"],
        padded_params["linear2_w"], padded_params["linear2_b"],
        padded_params["linear3_w"], padded_params["linear3_b"],
        padded_params["linear4_w"], padded_params["linear4_b"],
    )
    in_specs = [row_spec,
                w_spec, b_spec,
                w_spec, b_spec,
                w_spec, b_spec,
                w_spec, b_spec]

    out = pl.pallas_call(
        generator_kernel,
        out_shape=jax.ShapeDtypeStruct((padded_batch, LANE), jnp.float32),
        grid=grid,
        in_specs=in_specs,
        out_specs=row_spec,
        compiler_params=pltpu.CompilerParams(
            dimension_semantics=("parallel",)),  # shard batch across TCs on v7x
    )(*args)

    return out[:batch, :OUT_SIZE]


def reference_forward(x, params, compute_dtype=jnp.float32):
    """Pure-JAX reference.  compute_dtype=bf16 mirrors the kernel's cast pattern."""
    h = x
    for name in ("linear1", "linear2", "linear3"):
        h = _leaky_relu(
            jnp.dot(h.astype(compute_dtype),
                    params[name + "_w"].astype(compute_dtype),
                    preferred_element_type=jnp.float32) + params[name + "_b"])
    return (jnp.dot(h.astype(compute_dtype),
                    params["linear4_w"].astype(compute_dtype),
                    preferred_element_type=jnp.float32) + params["linear4_b"])


if __name__ == "__main__":
    key = jax.random.PRNGKey(0)
    key_params, key_x = jax.random.split(key)

    params = init_params(key_params)
    padded_params = pad_params(params)

    batch = 8
    x = jax.random.normal(key_x, (batch, INPUT_SIZE), jnp.float32)

    out = generator_forward(x, padded_params)
    out = jax.block_until_ready(out)

    assert out.shape == (batch, OUT_SIZE), out.shape

    # Primary check: against a reference that uses the same bf16-operand /
    # f32-accumulate dot pattern as the kernel.
    ref_bf16 = reference_forward(x, params, compute_dtype=jnp.bfloat16)
    assert jnp.allclose(out, ref_bf16, atol=1e-2, rtol=1e-2), \
        "mismatch vs bf16-matched reference"

    # Sanity check: against the full-f32 (torch-semantics) reference, with
    # tolerance loosened for bf16 weight/activation rounding.
    ref_f32 = reference_forward(x, params, compute_dtype=jnp.float32)
    assert jnp.allclose(out, ref_f32, atol=5e-2, rtol=5e-2), \
        "mismatch vs f32 reference"

    print("KERNEL_OK")
</pallas_src>

<mosaic_0001>
module attributes {stable_mosaic.version = 11 : i64} {
  func.func @generator_kernel(%arg0: i32, %arg1: memref<8x128xf32, #tpu.memory_space<vmem>>, %arg2: memref<128x128xbf16, #tpu.memory_space<vmem>>, %arg3: memref<1x128xf32, #tpu.memory_space<vmem>>, %arg4: memref<128x128xbf16, #tpu.memory_space<vmem>>, %arg5: memref<1x128xf32, #tpu.memory_space<vmem>>, %arg6: memref<128x128xbf16, #tpu.memory_space<vmem>>, %arg7: memref<1x128xf32, #tpu.memory_space<vmem>>, %arg8: memref<128x128xbf16, #tpu.memory_space<vmem>>, %arg9: memref<1x128xf32, #tpu.memory_space<vmem>>, %arg10: memref<8x128xf32, #tpu.memory_space<vmem>>) attributes {dimension_semantics = [#tpu.dimension_semantics<parallel>], iteration_bounds = array<i64: 1>, scalar_prefetch = 0 : i64, scratch_operands = 0 : i64, tpu.core_type = #tpu.core_type<tc>, window_params = [{transform_indices = @transform_0, window_bounds = array<i64: 8, 128>}, {pipeline_mode = #tpu.pipeline_mode<synchronous>, transform_indices = @transform_1, window_bounds = array<i64: 128, 128>}, {pipeline_mode = #tpu.pipeline_mode<synchronous>, transform_indices = @transform_2, window_bounds = array<i64: 1, 128>}, {pipeline_mode = #tpu.pipeline_mode<synchronous>, transform_indices = @transform_3, window_bounds = array<i64: 128, 128>}, {pipeline_mode = #tpu.pipeline_mode<synchronous>, transform_indices = @transform_4, window_bounds = array<i64: 1, 128>}, {pipeline_mode = #tpu.pipeline_mode<synchronous>, transform_indices = @transform_5, window_bounds = array<i64: 128, 128>}, {pipeline_mode = #tpu.pipeline_mode<synchronous>, transform_indices = @transform_6, window_bounds = array<i64: 1, 128>}, {pipeline_mode = #tpu.pipeline_mode<synchronous>, transform_indices = @transform_7, window_bounds = array<i64: 128, 128>}, {pipeline_mode = #tpu.pipeline_mode<synchronous>, transform_indices = @transform_8, window_bounds = array<i64: 1, 128>}, {transform_indices = @transform_9, window_bounds = array<i64: 8, 128>}]} {
    %c0 = arith.constant 0 : index
    %c0_0 = arith.constant 0 : index
    %0 = vector.load %arg1[%c0, %c0_0] : memref<8x128xf32, #tpu.memory_space<vmem>>, vector<8x128xf32>
    %1 = arith.truncf %0 : vector<8x128xf32> to vector<8x128xbf16>
    %c0_1 = arith.constant 0 : index
    %c0_2 = arith.constant 0 : index
    %2 = vector.load %arg2[%c0_1, %c0_2] : memref<128x128xbf16, #tpu.memory_space<vmem>>, vector<128x128xbf16>
    %cst = arith.constant dense<0.000000e+00> : vector<8x128xf32>
    %3 = tpu.matmul %1, %2, %cst {dimension_numbers = #tpu.dot_dimension_numbers<[1], [0], [0], [1], [0, 0, 1, 1], [], []>} : vector<8x128xbf16>, vector<128x128xbf16>, vector<8x128xf32> -> vector<8x128xf32>
    %c0_3 = arith.constant 0 : index
    %c0_4 = arith.constant 0 : index
    %4 = vector.load %arg3[%c0_3, %c0_4] : memref<1x128xf32, #tpu.memory_space<vmem>>, vector<1x128xf32>
    %5 = vector.broadcast %4 : vector<1x128xf32> to vector<8x128xf32>
    %6 = arith.addf %3, %5 : vector<8x128xf32>
    %cst_5 = arith.constant 0.000000e+00 : f32
    %7 = vector.broadcast %cst_5 : f32 to vector<8x128xf32>
    %8 = arith.cmpf ogt, %6, %7 : vector<8x128xf32>
    %cst_6 = arith.constant 0.00999999977 : f32
    %9 = vector.broadcast %cst_6 : f32 to vector<8x128xf32>
    %10 = arith.mulf %9, %6 : vector<8x128xf32>
    %11 = arith.select %8, %6, %10 : vector<8x128xi1>, vector<8x128xf32>
    %12 = arith.truncf %11 : vector<8x128xf32> to vector<8x128xbf16>
    %c0_7 = arith.constant 0 : index
    %c0_8 = arith.constant 0 : index
    %13 = vector.load %arg4[%c0_7, %c0_8] : memref<128x128xbf16, #tpu.memory_space<vmem>>, vector<128x128xbf16>
    %cst_9 = arith.constant dense<0.000000e+00> : vector<8x128xf32>
    %14 = tpu.matmul %12, %13, %cst_9 {dimension_numbers = #tpu.dot_dimension_numbers<[1], [0], [0], [1], [0, 0, 1, 1], [], []>} : vector<8x128xbf16>, vector<128x128xbf16>, vector<8x128xf32> -> vector<8x128xf32>
    %c0_10 = arith.constant 0 : index
    %c0_11 = arith.constant 0 : index
    %15 = vector.load %arg5[%c0_10, %c0_11] : memref<1x128xf32, #tpu.memory_space<vmem>>, vector<1x128xf32>
    %16 = vector.broadcast %15 : vector<1x128xf32> to vector<8x128xf32>
    %17 = arith.addf %14, %16 : vector<8x128xf32>
    %cst_12 = arith.constant 0.000000e+00 : f32
    %18 = vector.broadcast %cst_12 : f32 to vector<8x128xf32>
    %19 = arith.cmpf ogt, %17, %18 : vector<8x128xf32>
    %cst_13 = arith.constant 0.00999999977 : f32
    %20 = vector.broadcast %cst_13 : f32 to vector<8x128xf32>
    %21 = arith.mulf %20, %17 : vector<8x128xf32>
    %22 = arith.select %19, %17, %21 : vector<8x128xi1>, vector<8x128xf32>
    %23 = arith.truncf %22 : vector<8x128xf32> to vector<8x128xbf16>
    %c0_14 = arith.constant 0 : index
    %c0_15 = arith.constant 0 : index
    %24 = vector.load %arg6[%c0_14, %c0_15] : memref<128x128xbf16, #tpu.memory_space<vmem>>, vector<128x128xbf16>
    %cst_16 = arith.constant dense<0.000000e+00> : vector<8x128xf32>
    %25 = tpu.matmul %23, %24, %cst_16 {dimension_numbers = #tpu.dot_dimension_numbers<[1], [0], [0], [1], [0, 0, 1, 1], [], []>} : vector<8x128xbf16>, vector<128x128xbf16>, vector<8x128xf32> -> vector<8x128xf32>
    %c0_17 = arith.constant 0 : index
    %c0_18 = arith.constant 0 : index
    %26 = vector.load %arg7[%c0_17, %c0_18] : memref<1x128xf32, #tpu.memory_space<vmem>>, vector<1x128xf32>
    %27 = vector.broadcast %26 : vector<1x128xf32> to vector<8x128xf32>
    %28 = arith.addf %25, %27 : vector<8x128xf32>
    %cst_19 = arith.constant 0.000000e+00 : f32
    %29 = vector.broadcast %cst_19 : f32 to vector<8x128xf32>
    %30 = arith.cmpf ogt, %28, %29 : vector<8x128xf32>
    %cst_20 = arith.constant 0.00999999977 : f32
    %31 = vector.broadcast %cst_20 : f32 to vector<8x128xf32>
    %32 = arith.mulf %31, %28 : vector<8x128xf32>
    %33 = arith.select %30, %28, %32 : vector<8x128xi1>, vector<8x128xf32>
    %34 = arith.truncf %33 : vector<8x128xf32> to vector<8x128xbf16>
    %c0_21 = arith.constant 0 : index
    %c0_22 = arith.constant 0 : index
    %35 = vector.load %arg8[%c0_21, %c0_22] : memref<128x128xbf16, #tpu.memory_space<vmem>>, vector<128x128xbf16>
    %cst_23 = arith.constant dense<0.000000e+00> : vector<8x128xf32>
    %36 = tpu.matmul %34, %35, %cst_23 {dimension_numbers = #tpu.dot_dimension_numbers<[1], [0], [0], [1], [0, 0, 1, 1], [], []>} : vector<8x128xbf16>, vector<128x128xbf16>, vector<8x128xf32> -> vector<8x128xf32>
    %c0_24 = arith.constant 0 : index
    %c0_25 = arith.constant 0 : index
    %37 = vector.load %arg9[%c0_24, %c0_25] : memref<1x128xf32, #tpu.memory_space<vmem>>, vector<1x128xf32>
    %38 = vector.broadcast %37 : vector<1x128xf32> to vector<8x128xf32>
    %39 = arith.addf %36, %38 : vector<8x128xf32>
    %c0_26 = arith.constant 0 : index
    %c0_27 = arith.constant 0 : index
    %40 = vector.load %arg10[%c0_26, %c0_27] : memref<8x128xf32, #tpu.memory_space<vmem>>, vector<8x128xf32>
    tpu.vector_store %arg10[%c0_26, %c0_27], %39 {strides = array<i32>} : memref<8x128xf32, #tpu.memory_space<vmem>>, vector<8x128xf32>,
    return
  }
  func.func @transform_0(%arg0: i32) -> (i32, i32) {
    %c0_i32 = arith.constant 0 : i32
    %c0_i32_0 = arith.constant 0 : i32
    return %arg0, %c0_i32 : i32, i32
  }
  func.func @transform_1(%arg0: i32) -> (i32, i32) {
    %c0_i32 = arith.constant 0 : i32
    %c0_i32_0 = arith.constant 0 : i32
    %c0_i32_1 = arith.constant 0 : i32
    return %c0_i32, %c0_i32_0 : i32, i32
  }
  func.func @transform_2(%arg0: i32) -> (i32, i32) {
    %c0_i32 = arith.constant 0 : i32
    %c0_i32_0 = arith.constant 0 : i32
    %c0_i32_1 = arith.constant 0 : i32
    return %c0_i32, %c0_i32_0 : i32, i32
  }
  func.func @transform_3(%arg0: i32) -> (i32, i32) {
    %c0_i32 = arith.constant 0 : i32
    %c0_i32_0 = arith.constant 0 : i32
    %c0_i32_1 = arith.constant 0 : i32
    return %c0_i32, %c0_i32_0 : i32, i32
  }
  func.func @transform_4(%arg0: i32) -> (i32, i32) {
    %c0_i32 = arith.constant 0 : i32
    %c0_i32_0 = arith.constant 0 : i32
    %c0_i32_1 = arith.constant 0 : i32
    return %c0_i32, %c0_i32_0 : i32, i32
  }
  func.func @transform_5(%arg0: i32) -> (i32, i32) {
    %c0_i32 = arith.constant 0 : i32
    %c0_i32_0 = arith.constant 0 : i32
    %c0_i32_1 = arith.constant 0 : i32
    return %c0_i32, %c0_i32_0 : i32, i32
  }
  func.func @transform_6(%arg0: i32) -> (i32, i32) {
    %c0_i32 = arith.constant 0 : i32
    %c0_i32_0 = arith.constant 0 : i32
    %c0_i32_1 = arith.constant 0 : i32
    return %c0_i32, %c0_i32_0 : i32, i32
  }
  func.func @transform_7(%arg0: i32) -> (i32, i32) {
    %c0_i32 = arith.constant 0 : i32
    %c0_i32_0 = arith.constant 0 : i32
    %c0_i32_1 = arith.constant 0 : i32
    return %c0_i32, %c0_i32_0 : i32, i32
  }
  func.func @transform_8(%arg0: i32) -> (i32, i32) {
    %c0_i32 = arith.constant 0 : i32
    %c0_i32_0 = arith.constant 0 : i32
    %c0_i32_1 = arith.constant 0 : i32
    return %c0_i32, %c0_i32_0 : i32, i32
  }
  func.func @transform_9(%arg0: i32) -> (i32, i32) {
    %c0_i32 = arith.constant 0 : i32
    %c0_i32_0 = arith.constant 0 : i32
    return %arg0, %c0_i32 : i32, i32
  }
}

</mosaic_0001>

<llo_original>
// kernel: tpu_custom_call.1
$region0: #{tpu_custom_call.1}
  #allocation0 [shape = 'u32[]', space=smem, size = 0x4, offset = 0x4, fixed_abs, tag = 'smem constant byte address 0x4 - core index']
  #allocation1 [shape = 'u32[144,128]{1,0:T(1,128)}', space=vmem, size = 0x12000, scoped, tag = 'internal scratch']
  %s0 = inlined_call_operand.hbm [shape: f32[8,128], index: 0, kind: input, shape index: {}]
  %s1 = inlined_call_operand.hbm [shape: bf16[128,128], index: 1, kind: input, shape index: {}]
  %s2 = inlined_call_operand.vmem [shape: f32[1,128], index: 2, kind: input, shape index: {}]
  %s3 = inlined_call_operand.hbm [shape: bf16[128,128], index: 3, kind: input, shape index: {}]
  %s4 = inlined_call_operand.vmem [shape: f32[1,128], index: 4, kind: input, shape index: {}]
  %s5 = inlined_call_operand.hbm [shape: bf16[128,128], index: 5, kind: input, shape index: {}]
  %s6 = inlined_call_operand.vmem [shape: f32[1,128], index: 6, kind: input, shape index: {}]
  %s7 = inlined_call_operand.hbm [shape: bf16[128,128], index: 7, kind: input, shape index: {}]
  %s8 = inlined_call_operand.vmem [shape: f32[1,128], index: 8, kind: input, shape index: {}]
  %s9 = inlined_call_operand.hbm [shape: f32[8,128], index: 9, kind: output, shape index: {}]
  %s10 = sld [smem:[#allocation0]]
  $region66: #{tpu_custom_call.1} parent=0
    _
  %s12 = ssub.s32 1, %s10
  %s13 = scalar_select 0, %s12, %s10
  $region1: #{tpu_custom_call.1} parent=0
    #allocation2 [shape = 'u8[4096]{0}', space=vmem, size = 0x1000, scoped, tag = 'input window, operand 0, single buffered']
    #allocation3 [shape = 's32[1]{0}', space=sflag, size = 0x4, scoped, tag = 'scoped memory for tpu_custom_call.1']
    #allocation4 [shape = 's32[1]{0}', space=sflag, size = 0x4, scoped, tag = 'scoped memory for tpu_custom_call.1']
    #allocation5 [shape = 'u8[32768]{0}', space=vmem, size = 0x8000, scoped, tag = 'input window, operand 1, single buffered']
    #allocation6 [shape = 's32[1]{0}', space=sflag, size = 0x4, scoped, tag = 'scoped memory for tpu_custom_call.1']
    #allocation7 [shape = 'u8[32768]{0}', space=vmem, size = 0x8000, scoped, tag = 'input window, operand 3, single buffered']
    #allocation8 [shape = 'u8[32768]{0}', space=vmem, size = 0x8000, scoped, tag = 'input window, operand 5, single buffered']
    #allocation9 [shape = 's32[1]{0}', space=sflag, size = 0x4, scoped, tag = 'scoped memory for tpu_custom_call.1']
    #allocation10 [shape = 'u8[32768]{0}', space=vmem, size = 0x8000, scoped, tag = 'input window, operand 7, single buffered']
    #allocation11 [shape = 'u8[4096]{0}', space=vmem, size = 0x1000, scoped, tag = 'output window, operand 0, single buffered']
    %14 = vsyncpa [#allocation3], 0
    %15 = vsyncpa [#allocation6], 0
    %16 = vsyncpa [#allocation9], 0
    %17 = vsyncpa [#allocation4], 0
    // Predicated region
    $region2: #{tpu_custom_call.1} parent=1 // pred_check
      _
    $region3: #{tpu_custom_call.1} parent=1 // pred_check_branch
      %19 = sbr.rel (0) target = $region5
    $region4: #{tpu_custom_call.1} parent=1 // pred_region
      %s21 = ssub.s32 128, 128
      %22 = vsyncadd [#allocation3], %s21
      %s24 = sshll.u32 [#allocation2], 4
      %s25 = int_to_ptr.vmem [resolvable:$true] %s24
      %27 = dma.hbm_to_vmem [thread:$0]  %s0, 128, %s25, [#allocation3]
    $region5: #{tpu_custom_call.1} parent=1 // pred_fallthru
      _
    // Predicated region
    $region6: #{tpu_custom_call.1} parent=1 // pred_check
      _
    $region7: #{tpu_custom_call.1} parent=1 // pred_check_branch
      %29 = sbr.rel (0) target = $region9
    $region8: #{tpu_custom_call.1} parent=1 // pred_region
      %s31 = ssub.s32 1024, 1024
      %32 = vsyncadd [#allocation6], %s31
      %s33 = sshll.u32 [#allocation5], 4
      %s34 = int_to_ptr.vmem [resolvable:$true] %s33
      %39 = dma.hbm_to_vmem [thread:$0]  %s1, 1024, %s34, [#allocation6], 64, 64, 4
    $region9: #{tpu_custom_call.1} parent=1 // pred_fallthru
      _
    // Predicated region
    $region10: #{tpu_custom_call.1} parent=1 // pred_check
      _
    $region11: #{tpu_custom_call.1} parent=1 // pred_check_branch
      %41 = sbr.rel (0) target = $region13
    $region12: #{tpu_custom_call.1} parent=1 // pred_region
      _
    $region13: #{tpu_custom_call.1} parent=1 // pred_fallthru
      _
    // Predicated region
    $region14: #{tpu_custom_call.1} parent=1 // pred_check
      _
    $region15: #{tpu_custom_call.1} parent=1 // pred_check_branch
      %43 = sbr.rel (0) target = $region17
    $region16: #{tpu_custom_call.1} parent=1 // pred_region
      %s45 = ssub.s32 1024, 1024
      %46 = vsyncadd [#allocation6], %s45
      %s47 = sshll.u32 [#allocation7], 4
      %s48 = int_to_ptr.vmem [resolvable:$true] %s47
      %53 = dma.hbm_to_vmem [thread:$0]  %s3, 1024, %s48, [#allocation6], 64, 64, 4
    $region17: #{tpu_custom_call.1} parent=1 // pred_fallthru
      _
    // Predicated region
    $region18: #{tpu_custom_call.1} parent=1 // pred_check
      _
    $region19: #{tpu_custom_call.1} parent=1 // pred_check_branch
      %55 = sbr.rel (0) target = $region21
    $region20: #{tpu_custom_call.1} parent=1 // pred_region
      _
    $region21: #{tpu_custom_call.1} parent=1 // pred_fallthru
      _
    // Predicated region
    $region22: #{tpu_custom_call.1} parent=1 // pred_check
      _
    $region23: #{tpu_custom_call.1} parent=1 // pred_check_branch
      %57 = sbr.rel (0) target = $region25
    $region24: #{tpu_custom_call.1} parent=1 // pred_region
      %s59 = ssub.s32 1024, 1024
      %60 = vsyncadd [#allocation9], %s59
      %s61 = sshll.u32 [#allocation8], 4
      %s62 = int_to_ptr.vmem [resolvable:$true] %s61
      %67 = dma.hbm_to_vmem [thread:$0]  %s5, 1024, %s62, [#allocation9], 64, 64, 4
    $region25: #{tpu_custom_call.1} parent=1 // pred_fallthru
      _
    // Predicated region
    $region26: #{tpu_custom_call.1} parent=1 // pred_check
      _
    $region27: #{tpu_custom_call.1} parent=1 // pred_check_branch
      %69 = sbr.rel (0) target = $region29
    $region28: #{tpu_custom_call.1} parent=1 // pred_region
      _
    $region29: #{tpu_custom_call.1} parent=1 // pred_fallthru
      _
    // Predicated region
    $region30: #{tpu_custom_call.1} parent=1 // pred_check
      _
    $region31: #{tpu_custom_call.1} parent=1 // pred_check_branch
      %71 = sbr.rel (0) target = $region33
    $region32: #{tpu_custom_call.1} parent=1 // pred_region
      %s73 = ssub.s32 1024, 1024
      %74 = vsyncadd [#allocation9], %s73
      %s75 = sshll.u32 [#allocation10], 4
      %s76 = int_to_ptr.vmem [resolvable:$true] %s75
      %81 = dma.hbm_to_vmem [thread:$0]  %s7, 1024, %s76, [#allocation9], 64, 64, 4
    $region33: #{tpu_custom_call.1} parent=1 // pred_fallthru
      _
    // Predicated region
    $region34: #{tpu_custom_call.1} parent=1 // pred_check
      _
    $region35: #{tpu_custom_call.1} parent=1 // pred_check_branch
      %83 = sbr.rel (0) target = $region37
    $region36: #{tpu_custom_call.1} parent=1 // pred_region
      _
    $region37: #{tpu_custom_call.1} parent=1 // pred_fallthru
      _
    // Predicated region
    $region38: #{tpu_custom_call.1} parent=1 // pred_check
      _
    $region39: #{tpu_custom_call.1} parent=1 // pred_check_branch
      %85 = sbr.rel (0) target = $region41
    $region40: #{tpu_custom_call.1} parent=1 // pred_region
      %86 = dma.done [#allocation3], 128
    $region41: #{tpu_custom_call.1} parent=1 // pred_fallthru
      _
    // Predicated region
    $region42: #{tpu_custom_call.1} parent=1 // pred_check
      _
    $region43: #{tpu_custom_call.1} parent=1 // pred_check_branch
      %88 = sbr.rel (0) target = $region45
    $region44: #{tpu_custom_call.1} parent=1 // pred_region
      %89 = dma.done [#allocation6], 1024
    $region45: #{tpu_custom_call.1} parent=1 // pred_fallthru
      _
    // Predicated region
    $region46: #{tpu_custom_call.1} parent=1 // pred_check
      _
    $region47: #{tpu_custom_call.1} parent=1 // pred_check_branch
      %91 = sbr.rel (0) target = $region49
    $region48: #{tpu_custom_call.1} parent=1 // pred_region
      %92 = dma.done [#allocation6], 1024
    $region49: #{tpu_custom_call.1} parent=1 // pred_fallthru
      _
    // Predicated region
    $region50: #{tpu_custom_call.1} parent=1 // pred_check
      _
    $region51: #{tpu_custom_call.1} parent=1 // pred_check_branch
      %94 = sbr.rel (0) target = $region53
    $region52: #{tpu_custom_call.1} parent=1 // pred_region
      %95 = dma.done [#allocation9], 1024
    $region53: #{tpu_custom_call.1} parent=1 // pred_fallthru
      _
    // Predicated region
    $region54: #{tpu_custom_call.1} parent=1 // pred_check
      _
    $region55: #{tpu_custom_call.1} parent=1 // pred_check_branch
      %97 = sbr.rel (0) target = $region57
    $region56: #{tpu_custom_call.1} parent=1 // pred_region
      %98 = dma.done [#allocation9], 1024
    $region57: #{tpu_custom_call.1} parent=1 // pred_fallthru
      _
    %v100 = vld [vmem:[#allocation2] sm:$0xff]
    %v101 = vpack.c.bf16 %v100, %v100
    %v102 = vld [vmem:[#allocation5] sm:$0xf]
    %v103 = vld [vmem:[#allocation5 + $0x4] sm:$0xf]
    %v104 = vld [vmem:[#allocation5 + $0x8] sm:$0xf]
    %v105 = vld [vmem:[#allocation5 + $0xc] sm:$0xf]
    %v106 = vld [vmem:[#allocation5 + $0x10] sm:$0xf]
    %v107 = vld [vmem:[#allocation5 + $0x14] sm:$0xf]
    %v108 = vld [vmem:[#allocation5 + $0x18] sm:$0xf]
    %v109 = vld [vmem:[#allocation5 + $0x1c] sm:$0xf]
    %v110 = vld [vmem:[#allocation5 + $0x20] sm:$0xf]
    %v111 = vld [vmem:[#allocation5 + $0x24] sm:$0xf]
    %v112 = vld [vmem:[#allocation5 + $0x28] sm:$0xf]
    %v113 = vld [vmem:[#allocation5 + $0x2c] sm:$0xf]
    %v114 = vld [vmem:[#allocation5 + $0x30] sm:$0xf]
    %v115 = vld [vmem:[#allocation5 + $0x34] sm:$0xf]
    %v116 = vld [vmem:[#allocation5 + $0x38] sm:$0xf]
    %v117 = vld [vmem:[#allocation5 + $0x3c] sm:$0xf]
    %v118 = vld [vmem:[%s2] sm:$0x1]
    %v120 = vlaneseq
    %v121 = vshrl.u32 %v120, 7
    %v122 = vsub.s32 0, %v121
    %v123 = vrot.slane %v118, %v122
    %v141 = vunpack.c.l.b16 %v102
    %v142 = vunpack.c.l.b16 %v103
    %v143 = vunpack.c.l.b16 %v104
    %v144 = vunpack.c.l.b16 %v105
    %v145 = vunpack.c.l.b16 %v106
    %v146 = vunpack.c.l.b16 %v107
    %v147 = vunpack.c.l.b16 %v108
    %v148 = vunpack.c.l.b16 %v109
    %v149 = vunpack.c.l.b16 %v110
    %v150 = vunpack.c.l.b16 %v111
    %v151 = vunpack.c.l.b16 %v112
    %v152 = vunpack.c.l.b16 %v113
    %v153 = vunpack.c.l.b16 %v114
    %v154 = vunpack.c.l.b16 %v115
    %v155 = vunpack.c.l.b16 %v116
    %v156 = vunpack.c.l.b16 %v117
    %v157 = vpack.c.b16 %v142, %v141
    %v158 = vpack.c.b16 %v144, %v143
    %v159 = vpack.c.b16 %v146, %v145
    %v160 = vpack.c.b16 %v148, %v147
    %v161 = vpack.c.b16 %v150, %v149
    %v162 = vpack.c.b16 %v152, %v151
    %v163 = vpack.c.b16 %v154, %v153
    %v164 = vpack.c.b16 %v156, %v155
    %173 = vmatprep.subr.bf16.mxu0 0
    %174 = vmatpush1.bf16.msra.mxu0 %v157
    %175 = vmatprep.subr.bf16.mxu0 0
    %176 = vmatpush1.bf16.msra.mxu0 %v158
    %177 = vmatprep.subr.bf16.mxu0 0
    %178 = vmatpush1.bf16.msra.mxu0 %v159
    %179 = vmatprep.subr.bf16.mxu0 0
    %180 = vmatpush1.bf16.msra.mxu0 %v160
    %181 = vmatprep.subr.bf16.mxu0 0
    %182 = vmatpush1.bf16.msra.mxu0 %v161
    %183 = vmatprep.subr.bf16.mxu0 0
    %184 = vmatpush1.bf16.msra.mxu0 %v162
    %185 = vmatprep.subr.bf16.mxu0 0
    %186 = vmatpush1.bf16.msra.mxu0 %v163
    %187 = vmatprep.subr.bf16.mxu0 0
    %188 = vmatpush1.bf16.msra.mxu0 %v164
    %189 = vmatprep.subr.bf16.mxu0 0
    %190 = vmatpush1.bf16.msra.mxu0 0
    %191 = vmatprep.subr.bf16.mxu0 0
    %192 = vmatpush1.bf16.msra.mxu0 0
    %193 = vmatprep.subr.bf16.mxu0 0
    %194 = vmatpush1.bf16.msra.mxu0 0
    %195 = vmatprep.subr.bf16.mxu0 0
    %196 = vmatpush1.bf16.msra.mxu0 0
    %197 = vmatprep.subr.bf16.mxu0 0
    %198 = vmatpush1.bf16.msra.mxu0 0
    %199 = vmatprep.subr.bf16.mxu0 0
    %200 = vmatpush1.bf16.msra.mxu0 0
    %201 = vmatprep.subr.bf16.mxu0 0
    %202 = vmatpush1.bf16.msra.mxu0 0
    %203 = vmatprep.subr.bf16.mxu0 0
    %204 = vmatpush1.bf16.msra.mxu0 0
    %205 = vmatprep.mubr.bf16.mxu0 0
    %206 = vmatmul.mubr.bf16.gmra.mrb[0].mxu0 %v101
    %v207 = vpop.f32.mrb[0].mxu0
    %v208 = vadd.f32 %v123, %v207
    %v209 = vpop.f32.mrb[0].mxu0
    %v210 = vpop.f32.mrb[0].mxu0
    %v211 = vpop.f32.mrb[0].mxu0
    %212 = vdwg.mxu0
    %vm213 = vcmp.gt.f32.partialorder %v208, 0.0
    %v214 = vmul.f32 %v208, 0.01
    %v215 = vsel %vm213, %v208, %v214
    %v216 = vpack.c.bf16 %v215, %v215
    %v217 = vld [vmem:[#allocation7] sm:$0xf]
    %v218 = vld [vmem:[#allocation7 + $0x4] sm:$0xf]
    %v219 = vld [vmem:[#allocation7 + $0x8] sm:$0xf]
    %v220 = vld [vmem:[#allocation7 + $0xc] sm:$0xf]
    %v221 = vld [vmem:[#allocation7 + $0x10] sm:$0xf]
    %v222 = vld [vmem:[#allocation7 + $0x14] sm:$0xf]
    %v223 = vld [vmem:[#allocation7 + $0x18] sm:$0xf]
    %v224 = vld [vmem:[#allocation7 + $0x1c] sm:$0xf]
    %v225 = vld [vmem:[#allocation7 + $0x20] sm:$0xf]
    %v226 = vld [vmem:[#allocation7 + $0x24] sm:$0xf]
    %v227 = vld [vmem:[#allocation7 + $0x28] sm:$0xf]
    %v228 = vld [vmem:[#allocation7 + $0x2c] sm:$0xf]
    %v229 = vld [vmem:[#allocation7 + $0x30] sm:$0xf]
    %v230 = vld [vmem:[#allocation7 + $0x34] sm:$0xf]
    %v231 = vld [vmem:[#allocation7 + $0x38] sm:$0xf]
    %v232 = vld [vmem:[#allocation7 + $0x3c] sm:$0xf]
    %v233 = vld [vmem:[%s4] sm:$0x1]
    %v235 = vlaneseq
    %v236 = vshrl.u32 %v235, 7
    %v237 = vsub.s32 0, %v236
    %v238 = vrot.slane %v233, %v237
    %v256 = vunpack.c.l.b16 %v217
    %v257 = vunpack.c.l.b16 %v218
    %v258 = vunpack.c.l.b16 %v219
    %v259 = vunpack.c.l.b16 %v220
    %v260 = vunpack.c.l.b16 %v221
    %v261 = vunpack.c.l.b16 %v222
    %v262 = vunpack.c.l.b16 %v223
    %v263 = vunpack.c.l.b16 %v224
    %v264 = vunpack.c.l.b16 %v225
    %v265 = vunpack.c.l.b16 %v226
    %v266 = vunpack.c.l.b16 %v227
    %v267 = vunpack.c.l.b16 %v228
    %v268 = vunpack.c.l.b16 %v229
    %v269 = vunpack.c.l.b16 %v230
    %v270 = vunpack.c.l.b16 %v231
    %v271 = vunpack.c.l.b16 %v232
    %v272 = vpack.c.b16 %v257, %v256
    %v273 = vpack.c.b16 %v259, %v258
    %v274 = vpack.c.b16 %v261, %v260
    %v275 = vpack.c.b16 %v263, %v262
    %v276 = vpack.c.b16 %v265, %v264
    %v277 = vpack.c.b16 %v267, %v266
    %v278 = vpack.c.b16 %v269, %v268
    %v279 = vpack.c.b16 %v271, %v270
    %288 = vmatprep.subr.bf16.mxu0 0
    %289 = vmatpush1.bf16.msra.mxu0 %v272
    %290 = vmatprep.subr.bf16.mxu0 0
    %291 = vmatpush1.bf16.msra.mxu0 %v273
    %292 = vmatprep.subr.bf16.mxu0 0
    %293 = vmatpush1.bf16.msra.mxu0 %v274
    %294 = vmatprep.subr.bf16.mxu0 0
    %295 = vmatpush1.bf16.msra.mxu0 %v275
    %296 = vmatprep.subr.bf16.mxu0 0
    %297 = vmatpush1.bf16.msra.mxu0 %v276
    %298 = vmatprep.subr.bf16.mxu0 0
    %299 = vmatpush1.bf16.msra.mxu0 %v277
    %300 = vmatprep.subr.bf16.mxu0 0
    %301 = vmatpush1.bf16.msra.mxu0 %v278
    %302 = vmatprep.subr.bf16.mxu0 0
    %303 = vmatpush1.bf16.msra.mxu0 %v279
    %304 = vmatprep.subr.bf16.mxu0 0
    %305 = vmatpush1.bf16.msra.mxu0 0
    %306 = vmatprep.subr.bf16.mxu0 0
    %307 = vmatpush1.bf16.msra.mxu0 0
    %308 = vmatprep.subr.bf16.mxu0 0
    %309 = vmatpush1.bf16.msra.mxu0 0
    %310 = vmatprep.subr.bf16.mxu0 0
    %311 = vmatpush1.bf16.msra.mxu0 0
    %312 = vmatprep.subr.bf16.mxu0 0
    %313 = vmatpush1.bf16.msra.mxu0 0
    %314 = vmatprep.subr.bf16.mxu0 0
    %315 = vmatpush1.bf16.msra.mxu0 0
    %316 = vmatprep.subr.bf16.mxu0 0
    %317 = vmatpush1.bf16.msra.mxu0 0
    %318 = vmatprep.subr.bf16.mxu0 0
    %319 = vmatpush1.bf16.msra.mxu0 0
    %320 = vmatprep.mubr.bf16.mxu0 0
    %321 = vmatmul.mubr.bf16.gmra.mrb[0].mxu0 %v216
    %v322 = vpop.f32.mrb[0].mxu0
    %v323 = vadd.f32 %v238, %v322
    %v324 = vpop.f32.mrb[0].mxu0
    %v325 = vpop.f32.mrb[0].mxu0
    %v326 = vpop.f32.mrb[0].mxu0
    %327 = vdwg.mxu0
    %vm328 = vcmp.gt.f32.partialorder %v323, 0.0
    %v329 = vmul.f32 %v323, 0.01
    %v330 = vsel %vm328, %v323, %v329
    %v331 = vpack.c.bf16 %v330, %v330
    %v332 = vld [vmem:[#allocation8] sm:$0xf]
    %v333 = vld [vmem:[#allocation8 + $0x4] sm:$0xf]
    %v334 = vld [vmem:[#allocation8 + $0x8] sm:$0xf]
    %v335 = vld [vmem:[#allocation8 + $0xc] sm:$0xf]
    %v336 = vld [vmem:[#allocation8 + $0x10] sm:$0xf]
    %v337 = vld [vmem:[#allocation8 + $0x14] sm:$0xf]
    %v338 = vld [vmem:[#allocation8 + $0x18] sm:$0xf]
    %v339 = vld [vmem:[#allocation8 + $0x1c] sm:$0xf]
    %v340 = vld [vmem:[#allocation8 + $0x20] sm:$0xf]
    %v341 = vld [vmem:[#allocation8 + $0x24] sm:$0xf]
    %v342 = vld [vmem:[#allocation8 + $0x28] sm:$0xf]
    %v343 = vld [vmem:[#allocation8 + $0x2c] sm:$0xf]
    %v344 = vld [vmem:[#allocation8 + $0x30] sm:$0xf]
    %v345 = vld [vmem:[#allocation8 + $0x34] sm:$0xf]
    %v346 = vld [vmem:[#allocation8 + $0x38] sm:$0xf]
    %v347 = vld [vmem:[#allocation8 + $0x3c] sm:$0xf]
    %v348 = vld [vmem:[%s6] sm:$0x1]
    %v350 = vlaneseq
    %v351 = vshrl.u32 %v350, 7
    %v352 = vsub.s32 0, %v351
    %v353 = vrot.slane %v348, %v352
    %v371 = vunpack.c.l.b16 %v332
    %v372 = vunpack.c.l.b16 %v333
    %v373 = vunpack.c.l.b16 %v334
    %v374 = vunpack.c.l.b16 %v335
    %v375 = vunpack.c.l.b16 %v336
    %v376 = vunpack.c.l.b16 %v337
    %v377 = vunpack.c.l.b16 %v338
    %v378 = vunpack.c.l.b16 %v339
    %v379 = vunpack.c.l.b16 %v340
    %v380 = vunpack.c.l.b16 %v341
    %v381 = vunpack.c.l.b16 %v342
    %v382 = vunpack.c.l.b16 %v343
    %v383 = vunpack.c.l.b16 %v344
    %v384 = vunpack.c.l.b16 %v345
    %v385 = vunpack.c.l.b16 %v346
    %v386 = vunpack.c.l.b16 %v347
    %v387 = vpack.c.b16 %v372, %v371
    %v388 = vpack.c.b16 %v374, %v373
    %v389 = vpack.c.b16 %v376, %v375
    %v390 = vpack.c.b16 %v378, %v377
    %v391 = vpack.c.b16 %v380, %v379
    %v392 = vpack.c.b16 %v382, %v381
    %v393 = vpack.c.b16 %v384, %v383
    %v394 = vpack.c.b16 %v386, %v385
    %403 = vmatprep.subr.bf16.mxu0 0
    %404 = vmatpush1.bf16.msra.mxu0 %v387
    %405 = vmatprep.subr.bf16.mxu0 0
    %406 = vmatpush1.bf16.msra.mxu0 %v388
    %407 = vmatprep.subr.bf16.mxu0 0
    %408 = vmatpush1.bf16.msra.mxu0 %v389
    %409 = vmatprep.subr.bf16.mxu0 0
    %410 = vmatpush1.bf16.msra.mxu0 %v390
    %411 = vmatprep.subr.bf16.mxu0 0
    %412 = vmatpush1.bf16.msra.mxu0 %v391
    %413 = vmatprep.subr.bf16.mxu0 0
    %414 = vmatpush1.bf16.msra.mxu0 %v392
    %415 = vmatprep.subr.bf16.mxu0 0
    %416 = vmatpush1.bf16.msra.mxu0 %v393
    %417 = vmatprep.subr.bf16.mxu0 0
    %418 = vmatpush1.bf16.msra.mxu0 %v394
    %419 = vmatprep.subr.bf16.mxu0 0
    %420 = vmatpush1.bf16.msra.mxu0 0
    %421 = vmatprep.subr.bf16.mxu0 0
    %422 = vmatpush1.bf16.msra.mxu0 0
    %423 = vmatprep.subr.bf16.mxu0 0
    %424 = vmatpush1.bf16.msra.mxu0 0
    %425 = vmatprep.subr.bf16.mxu0 0
    %426 = vmatpush1.bf16.msra.mxu0 0
    %427 = vmatprep.subr.bf16.mxu0 0
    %428 = vmatpush1.bf16.msra.mxu0 0
    %429 = vmatprep.subr.bf16.mxu0 0
    %430 = vmatpush1.bf16.msra.mxu0 0
    %431 = vmatprep.subr.bf16.mxu0 0
    %432 = vmatpush1.bf16.msra.mxu0 0
    %433 = vmatprep.subr.bf16.mxu0 0
    %434 = vmatpush1.bf16.msra.mxu0 0
    %435 = vmatprep.mubr.bf16.mxu0 0
    %436 = vmatmul.mubr.bf16.gmra.mrb[0].mxu0 %v331
    %v437 = vpop.f32.mrb[0].mxu0
    %v438 = vadd.f32 %v353, %v437
    %v439 = vpop.f32.mrb[0].mxu0
    %v440 = vpop.f32.mrb[0].mxu0
    %v441 = vpop.f32.mrb[0].mxu0
    %442 = vdwg.mxu0
    %vm443 = vcmp.gt.f32.partialorder %v438, 0.0
    %v444 = vmul.f32 %v438, 0.01
    %v445 = vsel %vm443, %v438, %v444
    %v446 = vpack.c.bf16 %v445, %v445
    %v447 = vld [vmem:[#allocation10] sm:$0xf]
    %v448 = vld [vmem:[#allocation10 + $0x4] sm:$0xf]
    %v449 = vld [vmem:[#allocation10 + $0x8] sm:$0xf]
    %v450 = vld [vmem:[#allocation10 + $0xc] sm:$0xf]
    %v451 = vld [vmem:[#allocation10 + $0x10] sm:$0xf]
    %v452 = vld [vmem:[#allocation10 + $0x14] sm:$0xf]
    %v453 = vld [vmem:[#allocation10 + $0x18] sm:$0xf]
    %v454 = vld [vmem:[#allocation10 + $0x1c] sm:$0xf]
    %v455 = vld [vmem:[#allocation10 + $0x20] sm:$0xf]
    %v456 = vld [vmem:[#allocation10 + $0x24] sm:$0xf]
    %v457 = vld [vmem:[#allocation10 + $0x28] sm:$0xf]
    %v458 = vld [vmem:[#allocation10 + $0x2c] sm:$0xf]
    %v459 = vld [vmem:[#allocation10 + $0x30] sm:$0xf]
    %v460 = vld [vmem:[#allocation10 + $0x34] sm:$0xf]
    %v461 = vld [vmem:[#allocation10 + $0x38] sm:$0xf]
    %v462 = vld [vmem:[#allocation10 + $0x3c] sm:$0xf]
    %v463 = vld [vmem:[%s8] sm:$0x1]
    %v465 = vlaneseq
    %v466 = vshrl.u32 %v465, 7
    %v467 = vsub.s32 0, %v466
    %v468 = vrot.slane %v463, %v467
    %v486 = vunpack.c.l.b16 %v447
    %v487 = vunpack.c.l.b16 %v448
    %v488 = vunpack.c.l.b16 %v449
    %v489 = vunpack.c.l.b16 %v450
    %v490 = vunpack.c.l.b16 %v451
    %v491 = vunpack.c.l.b16 %v452
    %v492 = vunpack.c.l.b16 %v453
    %v493 = vunpack.c.l.b16 %v454
    %v494 = vunpack.c.l.b16 %v455
    %v495 = vunpack.c.l.b16 %v456
    %v496 = vunpack.c.l.b16 %v457
    %v497 = vunpack.c.l.b16 %v458
    %v498 = vunpack.c.l.b16 %v459
    %v499 = vunpack.c.l.b16 %v460
    %v500 = vunpack.c.l.b16 %v461
    %v501 = vunpack.c.l.b16 %v462
    %v502 = vpack.c.b16 %v487, %v486
    %v503 = vpack.c.b16 %v489, %v488
    %v504 = vpack.c.b16 %v491, %v490
    %v505 = vpack.c.b16 %v493, %v492
    %v506 = vpack.c.b16 %v495, %v494
    %v507 = vpack.c.b16 %v497, %v496
    %v508 = vpack.c.b16 %v499, %v498
    %v509 = vpack.c.b16 %v501, %v500
    %518 = vmatprep.subr.bf16.mxu0 0
    %519 = vmatpush1.bf16.msra.mxu0 %v502
    %520 = vmatprep.subr.bf16.mxu0 0
    %521 = vmatpush1.bf16.msra.mxu0 %v503
    %522 = vmatprep.subr.bf16.mxu0 0
    %523 = vmatpush1.bf16.msra.mxu0 %v504
    %524 = vmatprep.subr.bf16.mxu0 0
    %525 = vmatpush1.bf16.msra.mxu0 %v505
    %526 = vmatprep.subr.bf16.mxu0 0
    %527 = vmatpush1.bf16.msra.mxu0 %v506
    %528 = vmatprep.subr.bf16.mxu0 0
    %529 = vmatpush1.bf16.msra.mxu0 %v507
    %530 = vmatprep.subr.bf16.mxu0 0
    %531 = vmatpush1.bf16.msra.mxu0 %v508
    %532 = vmatprep.subr.bf16.mxu0 0
    %533 = vmatpush1.bf16.msra.mxu0 %v509
    %534 = vmatprep.subr.bf16.mxu0 0
    %535 = vmatpush1.bf16.msra.mxu0 0
    %536 = vmatprep.subr.bf16.mxu0 0
    %537 = vmatpush1.bf16.msra.mxu0 0
    %538 = vmatprep.subr.bf16.mxu0 0
    %539 = vmatpush1.bf16.msra.mxu0 0
    %540 = vmatprep.subr.bf16.mxu0 0
    %541 = vmatpush1.bf16.msra.mxu0 0
    %542 = vmatprep.subr.bf16.mxu0 0
    %543 = vmatpush1.bf16.msra.mxu0 0
    %544 = vmatprep.subr.bf16.mxu0 0
    %545 = vmatpush1.bf16.msra.mxu0 0
    %546 = vmatprep.subr.bf16.mxu0 0
    %547 = vmatpush1.bf16.msra.mxu0 0
    %548 = vmatprep.subr.bf16.mxu0 0
    %549 = vmatpush1.bf16.msra.mxu0 0
    %550 = vmatprep.mubr.bf16.mxu0 0
    %551 = vmatmul.mubr.bf16.gmra.mrb[0].mxu0 %v446
    %v552 = vpop.f32.mrb[0].mxu0
    %v553 = vadd.f32 %v468, %v552
    %v554 = vpop.f32.mrb[0].mxu0
    %v555 = vpop.f32.mrb[0].mxu0
    %v556 = vpop.f32.mrb[0].mxu0
    %557 = vdwg.mxu0
    %558 = vst [vmem:[#allocation11] sm:$0xff] %v553
    // Predicated region
    $region58: #{tpu_custom_call.1} parent=1 // pred_check
      _
    $region59: #{tpu_custom_call.1} parent=1 // pred_check_branch
      %560 = sbr.rel (0) target = $region61
    $region60: #{tpu_custom_call.1} parent=1 // pred_region
      %s562 = ssub.s32 128, 128
      %563 = vsyncadd [#allocation4], %s562
      %s565 = sshll.u32 [#allocation11], 4
      %s566 = int_to_ptr.vmem [resolvable:$true] %s565
      %568 = dma.vmem_to_hbm [thread:$0]  %s566, 128, %s9, [#allocation4]
    $region61: #{tpu_custom_call.1} parent=1 // pred_fallthru
      _
    // Predicated region
    $region62: #{tpu_custom_call.1} parent=1 // pred_check
      _
    $region63: #{tpu_custom_call.1} parent=1 // pred_check_branch
      %570 = sbr.rel (0) target = $region65
    $region64: #{tpu_custom_call.1} parent=1 // pred_region
      %571 = dma.done [#allocation4], 128
    $region65: #{tpu_custom_call.1} parent=1 // pred_fallthru
      _
    %572 = vsyncpa [#allocation3], 1
    %573 = vsyncpa [#allocation6], 1
    %574 = vsyncpa [#allocation9], 1
    %575 = vsyncpa [#allocation4], 1

</llo_original>
